<compile_context>
chip_gen: v5e
topology: v5e:2x2
jax: 0.10.0
libtpu: 0.0.40
codegen_flags: <defaults>
</compile_context>

<pallas_src>
import functools

import jax
import jax.numpy as jnp
from jax import lax
from jax.experimental import pallas as pl
from jax.experimental.pallas import tpu as pltpu


def _mixvpr_kernel(x_ref, ln_g_ref, ln_b_ref, w1_ref, b1_ref, w2_ref, b2_ref,
                   wr_ref, wct_ref, bias_ref, o_ref, *, mix_depth, num_batch,
                   channels):
    """One grid step = `num_batch` batch elements.

    x_ref   : (num_batch * C, HW)        f32
    ln_g/b  : (D, 1, HW)                 f32
    w1      : (D, HW, hidden)  bf16      b1: (D, 1, hidden) f32
    w2      : (D, hidden, HW)  bf16      b2: (D, 1, HW)     f32
    wr      : (out_rows, HW)   bf16      (natural PyTorch orientation)
    wct     : (C, out_C)       bf16      (= Wc^T)
    bias    : (out_rows, out_C) f32      (= sum_hw(Wr)[:,None]*bc[None,:] + br[:,None])
    o_ref   : (num_batch, out_rows, out_C) f32   (lane-dense: out_C on lanes)
    """
    hw = x_ref.shape[-1]
    inv_hw = 1.0 / hw

    x = x_ref[...]                                  # (TB*C, HW) f32

    # ---- FeatureMixerLayer stack: LN -> Linear -> ReLU -> Linear, residual ----
    for d in range(mix_depth):
        gamma = ln_g_ref[d]                         # (1, HW)
        beta = ln_b_ref[d]                          # (1, HW)
        # one-pass statistics: E[x], E[x^2]
        s1 = jnp.sum(x, axis=-1, keepdims=True)
        s2 = jnp.sum(x * x, axis=-1, keepdims=True)
        mu = s1 * inv_hw
        var = jnp.maximum(s2 * inv_hw - mu * mu, 0.0)
        xn = (x - mu) * lax.rsqrt(var + 1e-5) * gamma + beta

        h = jnp.dot(xn.astype(jnp.bfloat16), w1_ref[d],
                    preferred_element_type=jnp.float32) + b1_ref[d]
        h = jnp.maximum(h, 0.0)
        y = jnp.dot(h.astype(jnp.bfloat16), w2_ref[d],
                    preferred_element_type=jnp.float32) + b2_ref[d]
        x = x + y                                   # residual, f32

    # ---- projections (commuted: contract HW first, then C) + L2 normalize ----
    wr = wr_ref[...]                                # (out_rows, HW)  bf16
    wct = wct_ref[...]                              # (C, out_C)      bf16
    bias = bias_ref[...]                            # (out_rows, out_C) f32
    xb = x.astype(jnp.bfloat16)
    nt_dims = (((1,), (1,)), ((), ()))              # contract last dim with last dim

    for t in range(num_batch):
        x_b = xb[t * channels:(t + 1) * channels, :]            # (C, HW) bf16
        # t_bt[r, c] = sum_hw Wr[r, hw] * x_b[c, hw]
        t_bt = lax.dot_general(wr, x_b, nt_dims,
                               preferred_element_type=jnp.float32)  # (out_rows, C)
        # z[r, oc] = sum_c t_bt[r, c] * Wc[oc, c] + bc[oc]*sum(Wr[r]) + br[r]
        z = jnp.dot(t_bt.astype(jnp.bfloat16), wct,
                    preferred_element_type=jnp.float32) + bias      # (out_rows, out_C)
        # L2 normalize over the whole descriptor (order-invariant).
        z = z * lax.rsqrt(jnp.maximum(jnp.sum(z * z), 1e-24))
        o_ref[t] = z


def prepare_params(params):
    """PyTorch-layout f32 params -> kernel params (pre-transposed, bf16 weights,
    combined projection bias)."""
    ln_g, ln_b, w1, b1, w2, b2, wc, bc, wr, br = params
    w1t = jnp.transpose(w1, (0, 2, 1)).astype(jnp.bfloat16)      # (D, HW, hidden)
    w2t = jnp.transpose(w2, (0, 2, 1)).astype(jnp.bfloat16)      # (D, hidden, HW)
    wct = jnp.transpose(wc, (1, 0)).astype(jnp.bfloat16)         # (C, out_C)
    wrb = wr.astype(jnp.bfloat16)                                # (out_rows, HW)
    s = jnp.sum(wr, axis=-1)                                     # (out_rows,)
    bias_t = (s[:, None] * bc[None, :] + br[:, None]).astype(jnp.float32)
    return (ln_g[:, None, :].astype(jnp.float32),
            ln_b[:, None, :].astype(jnp.float32),
            w1t, b1[:, None, :].astype(jnp.float32),
            w2t, b2[:, None, :].astype(jnp.float32),
            wrb, wct, bias_t)


def mixvpr_forward(x_nchw, params, *, mix_depth, max_batch_block=8):
    B, C, H, W = x_nchw.shape
    HW = H * W

    consts = prepare_params(params)
    (ln_g, ln_b, w1t, b1, w2t, b2, wrb, wct, bias_t) = consts
    out_rows, out_c = bias_t.shape

    # Batch tile: enlarge the MXU M dim (= tb*C) toward >=256 without blowing
    # VMEM; tb must divide B.
    tb = max(1, min(B, max_batch_block, pl.cdiv(256, C)))
    while tb > 1 and (B % tb != 0 or tb * C * HW * 4 > 4 * 2**20):
        tb -= 1

    x2 = x_nchw.reshape(B * C, HW).astype(jnp.float32)

    full = lambda a: pl.BlockSpec(a.shape, lambda i, _n=a.ndim: (0,) * _n)

    nbytes = lambda a: a.size * a.dtype.itemsize
    block_bytes = tb * C * HW * 4 + tb * out_rows * out_c * 4
    const_bytes = sum(nbytes(a) for a in consts)
    # double-buffered x/out blocks + (conservatively double-buffered) weights
    # + slack, clamped to a range safe on v5e/v6e/v7x scoped-VMEM defaults.
    vmem_limit = int(min(max(2 * block_bytes + 2 * const_bytes + 2 * 2**20,
                             16 * 2**20), 32 * 2**20))

    out = pl.pallas_call(
        functools.partial(_mixvpr_kernel, mix_depth=mix_depth,
                          num_batch=tb, channels=C),
        out_shape=jax.ShapeDtypeStruct((B, out_rows, out_c), jnp.float32),
        grid_spec=pltpu.PrefetchScalarGridSpec(
            num_scalar_prefetch=0,
            grid=(B // tb,),
            in_specs=[pl.BlockSpec((tb * C, HW), lambda i: (i, 0))]
                     + [full(a) for a in consts],
            out_specs=pl.BlockSpec((tb, out_rows, out_c),
                                   lambda i: (i, 0, 0)),
        ),
        compiler_params=pltpu.CompilerParams(
            dimension_semantics=("parallel",),
            vmem_limit_bytes=vmem_limit),
    )(x2, *consts)

    # Kernel emits z^T per batch: (B, out_rows, out_C). Reorder to the PyTorch
    # flatten order of (B, out_C, out_rows) -> (B, out_C*out_rows).
    return jnp.transpose(out, (0, 2, 1)).reshape(B, out_c * out_rows)


def make_params(key, *, in_channels, hw, out_channels, out_rows, mix_depth,
                mlp_ratio):
    """PyTorch-layout synthetic parameters (Linear weights trunc_normal(0.02))."""
    hidden = int(hw * mlp_ratio)
    ks = jax.random.split(key, 2 * mix_depth + 4)
    ki = iter(ks)

    def trunc(k, shape, std=0.02):
        return (std * jax.random.truncated_normal(k, -2.0, 2.0, shape)
                ).astype(jnp.float32)

    ln_g = jnp.ones((mix_depth, hw), jnp.float32)
    ln_b = jnp.zeros((mix_depth, hw), jnp.float32)
    w1 = jnp.stack([trunc(next(ki), (hidden, hw)) for _ in range(mix_depth)])
    b1 = jnp.zeros((mix_depth, hidden), jnp.float32)
    w2 = jnp.stack([trunc(next(ki), (hw, hidden)) for _ in range(mix_depth)])
    b2 = jnp.zeros((mix_depth, hw), jnp.float32)
    # channel_proj / row_proj: deterministic synthetic init.
    wc = trunc(next(ki), (out_channels, in_channels), std=0.05)
    bc = trunc(next(ki), (out_channels,), std=0.05)
    wr = trunc(next(ki), (out_rows, hw), std=0.05)
    br = trunc(next(ki), (out_rows,), std=0.05)
    return (ln_g, ln_b, w1, b1, w2, b2, wc, bc, wr, br)


def mixvpr_reference(x_nchw, params, *, mix_depth):
    """Pure-JAX f32 reference of the PyTorch forward."""
    ln_g, ln_b, w1, b1, w2, b2, wc, bc, wr, br = params
    B, C, H, W = x_nchw.shape
    x = x_nchw.reshape(B, C, H * W).astype(jnp.float32)
    for d in range(mix_depth):
        mu = jnp.mean(x, axis=-1, keepdims=True)
        var = jnp.mean((x - mu) ** 2, axis=-1, keepdims=True)
        xn = (x - mu) * lax.rsqrt(var + 1e-5) * ln_g[d] + ln_b[d]
        h = jnp.maximum(xn @ w1[d].T + b1[d], 0.0)
        x = x + (h @ w2[d].T + b2[d])
    x = jnp.transpose(x, (0, 2, 1)) @ wc.T + bc       # (B, HW, out_C)
    x = jnp.transpose(x, (0, 2, 1)) @ wr.T + br       # (B, out_C, out_rows)
    x = x.reshape(B, -1)
    n = jnp.sqrt(jnp.sum(x * x, axis=-1, keepdims=True))
    return x / jnp.maximum(n, 1e-12)


if __name__ == "__main__":
    # Small, module-consistent shapes.
    B, C, H, W = 2, 16, 8, 8
    out_channels, out_rows, mix_depth, mlp_ratio = 32, 4, 2, 1
    hw = H * W

    key = jax.random.PRNGKey(0)
    kx, kp = jax.random.split(key)
    x = jax.random.normal(kx, (B, C, H, W), dtype=jnp.float32)
    params = make_params(kp, in_channels=C, hw=hw, out_channels=out_channels,
                         out_rows=out_rows, mix_depth=mix_depth,
                         mlp_ratio=mlp_ratio)

    out = mixvpr_forward(x, params, mix_depth=mix_depth)
    out = jax.block_until_ready(out)

    ref = mixvpr_reference(x, params, mix_depth=mix_depth)
    assert out.shape == (B, out_channels * out_rows)
    # bf16 MXU inputs + one-pass variance -> compare with a loosened tolerance.
    assert jnp.allclose(out, ref, atol=1e-2, rtol=1e-2), "mismatch vs reference"

    print("KERNEL_OK")
</pallas_src>

<mosaic_0001>
module attributes {stable_mosaic.version = 11 : i64} {
  func.func @_mixvpr_kernel(%arg0: i32, %arg1: memref<32x64xf32, #tpu.memory_space<vmem>>, %arg2: memref<2x1x64xf32, #tpu.memory_space<vmem>>, %arg3: memref<2x1x64xf32, #tpu.memory_space<vmem>>, %arg4: memref<2x64x64xbf16, #tpu.memory_space<vmem>>, %arg5: memref<2x1x64xf32, #tpu.memory_space<vmem>>, %arg6: memref<2x64x64xbf16, #tpu.memory_space<vmem>>, %arg7: memref<2x1x64xf32, #tpu.memory_space<vmem>>, %arg8: memref<4x64xbf16, #tpu.memory_space<vmem>>, %arg9: memref<16x32xbf16, #tpu.memory_space<vmem>>, %arg10: memref<4x32xf32, #tpu.memory_space<vmem>>, %arg11: memref<2x4x32xf32, #tpu.memory_space<vmem>>) attributes {dimension_semantics = [#tpu.dimension_semantics<parallel>], iteration_bounds = array<i64: 1>, scalar_prefetch = 0 : i64, scratch_operands = 0 : i64, tpu.core_type = #tpu.core_type<tc>, window_params = [{transform_indices = @transform_0, window_bounds = array<i64: 32, 64>}, {pipeline_mode = #tpu.pipeline_mode<synchronous>, transform_indices = @transform_1, window_bounds = array<i64: 2, 1, 64>}, {pipeline_mode = #tpu.pipeline_mode<synchronous>, transform_indices = @transform_2, window_bounds = array<i64: 2, 1, 64>}, {pipeline_mode = #tpu.pipeline_mode<synchronous>, transform_indices = @transform_3, window_bounds = array<i64: 2, 64, 64>}, {pipeline_mode = #tpu.pipeline_mode<synchronous>, transform_indices = @transform_4, window_bounds = array<i64: 2, 1, 64>}, {pipeline_mode = #tpu.pipeline_mode<synchronous>, transform_indices = @transform_5, window_bounds = array<i64: 2, 64, 64>}, {pipeline_mode = #tpu.pipeline_mode<synchronous>, transform_indices = @transform_6, window_bounds = array<i64: 2, 1, 64>}, {pipeline_mode = #tpu.pipeline_mode<synchronous>, transform_indices = @transform_7, window_bounds = array<i64: 4, 64>}, {pipeline_mode = #tpu.pipeline_mode<synchronous>, transform_indices = @transform_8, window_bounds = array<i64: 16, 32>}, {pipeline_mode = #tpu.pipeline_mode<synchronous>, transform_indices = @transform_9, window_bounds = array<i64: 4, 32>}, {transform_indices = @transform_10, window_bounds = array<i64: 2, 4, 32>}]} {
    %c0 = arith.constant 0 : index
    %c0_0 = arith.constant 0 : index
    %0 = vector.load %arg1[%c0, %c0_0] : memref<32x64xf32, #tpu.memory_space<vmem>>, vector<32x64xf32>
    %c0_1 = arith.constant 0 : index
    %c0_2 = arith.constant 0 : index
    %c0_3 = arith.constant 0 : index
    %1 = vector.load %arg2[%c0_1, %c0_2, %c0_3] : memref<2x1x64xf32, #tpu.memory_space<vmem>>, vector<1x1x64xf32>
    %2 = vector.shape_cast %1 : vector<1x1x64xf32> to vector<1x64xf32>
    %c0_4 = arith.constant 0 : index
    %c0_5 = arith.constant 0 : index
    %c0_6 = arith.constant 0 : index
    %3 = vector.load %arg3[%c0_4, %c0_5, %c0_6] : memref<2x1x64xf32, #tpu.memory_space<vmem>>, vector<1x1x64xf32>
    %4 = vector.shape_cast %3 : vector<1x1x64xf32> to vector<1x64xf32>
    %cst = arith.constant dense<0.000000e+00> : vector<32xf32>
    %5 = vector.multi_reduction <add>, %0, %cst [1] : vector<32x64xf32> to vector<32xf32>
    %6 = vector.shape_cast %5 : vector<32xf32> to vector<32x1xf32>
    %7 = arith.mulf %0, %0 : vector<32x64xf32>
    %cst_7 = arith.constant dense<0.000000e+00> : vector<32xf32>
    %8 = vector.multi_reduction <add>, %7, %cst_7 [1] : vector<32x64xf32> to vector<32xf32>
    %9 = vector.shape_cast %8 : vector<32xf32> to vector<32x1xf32>
    %cst_8 = arith.constant 1.562500e-02 : f32
    %10 = vector.broadcast %cst_8 : f32 to vector<32x1xf32>
    %11 = arith.mulf %6, %10 : vector<32x1xf32>
    %cst_9 = arith.constant 1.562500e-02 : f32
    %12 = vector.broadcast %cst_9 : f32 to vector<32x1xf32>
    %13 = arith.mulf %9, %12 : vector<32x1xf32>
    %14 = arith.mulf %11, %11 : vector<32x1xf32>
    %15 = arith.subf %13, %14 : vector<32x1xf32>
    %cst_10 = arith.constant 0.000000e+00 : f32
    %16 = vector.broadcast %cst_10 : f32 to vector<32x1xf32>
    %17 = arith.maximumf %15, %16 : vector<32x1xf32>
    %18 = vector.broadcast %11 : vector<32x1xf32> to vector<32x64xf32>
    %19 = arith.subf %0, %18 : vector<32x64xf32>
    %cst_11 = arith.constant 9.99999974E-6 : f32
    %20 = vector.broadcast %cst_11 : f32 to vector<32x1xf32>
    %21 = arith.addf %17, %20 : vector<32x1xf32>
    %22 = math.rsqrt %21 : vector<32x1xf32>
    %23 = vector.broadcast %22 : vector<32x1xf32> to vector<32x64xf32>
    %24 = arith.mulf %19, %23 : vector<32x64xf32>
    %25 = vector.broadcast %2 : vector<1x64xf32> to vector<32x64xf32>
    %26 = arith.mulf %24, %25 : vector<32x64xf32>
    %27 = vector.broadcast %4 : vector<1x64xf32> to vector<32x64xf32>
    %28 = arith.addf %26, %27 : vector<32x64xf32>
    %29 = arith.truncf %28 : vector<32x64xf32> to vector<32x64xbf16>
    %c0_12 = arith.constant 0 : index
    %c0_13 = arith.constant 0 : index
    %c0_14 = arith.constant 0 : index
    %30 = vector.load %arg4[%c0_12, %c0_13, %c0_14] : memref<2x64x64xbf16, #tpu.memory_space<vmem>>, vector<1x64x64xbf16>
    %31 = vector.shape_cast %30 : vector<1x64x64xbf16> to vector<64x64xbf16>
    %cst_15 = arith.constant dense<0.000000e+00> : vector<32x64xf32>
    %32 = tpu.matmul %29, %31, %cst_15 {dimension_numbers = #tpu.dot_dimension_numbers<[1], [0], [0], [1], [0, 0, 1, 1], [], []>} : vector<32x64xbf16>, vector<64x64xbf16>, vector<32x64xf32> -> vector<32x64xf32>
    %c0_16 = arith.constant 0 : index
    %c0_17 = arith.constant 0 : index
    %c0_18 = arith.constant 0 : index
    %33 = vector.load %arg5[%c0_16, %c0_17, %c0_18] : memref<2x1x64xf32, #tpu.memory_space<vmem>>, vector<1x1x64xf32>
    %34 = vector.shape_cast %33 : vector<1x1x64xf32> to vector<1x64xf32>
    %35 = vector.broadcast %34 : vector<1x64xf32> to vector<32x64xf32>
    %36 = arith.addf %32, %35 : vector<32x64xf32>
    %cst_19 = arith.constant 0.000000e+00 : f32
    %37 = vector.broadcast %cst_19 : f32 to vector<32x64xf32>
    %38 = arith.maximumf %36, %37 : vector<32x64xf32>
    %39 = arith.truncf %38 : vector<32x64xf32> to vector<32x64xbf16>
    %c0_20 = arith.constant 0 : index
    %c0_21 = arith.constant 0 : index
    %c0_22 = arith.constant 0 : index
    %40 = vector.load %arg6[%c0_20, %c0_21, %c0_22] : memref<2x64x64xbf16, #tpu.memory_space<vmem>>, vector<1x64x64xbf16>
    %41 = vector.shape_cast %40 : vector<1x64x64xbf16> to vector<64x64xbf16>
    %cst_23 = arith.constant dense<0.000000e+00> : vector<32x64xf32>
    %42 = tpu.matmul %39, %41, %cst_23 {dimension_numbers = #tpu.dot_dimension_numbers<[1], [0], [0], [1], [0, 0, 1, 1], [], []>} : vector<32x64xbf16>, vector<64x64xbf16>, vector<32x64xf32> -> vector<32x64xf32>
    %c0_24 = arith.constant 0 : index
    %c0_25 = arith.constant 0 : index
    %c0_26 = arith.constant 0 : index
    %43 = vector.load %arg7[%c0_24, %c0_25, %c0_26] : memref<2x1x64xf32, #tpu.memory_space<vmem>>, vector<1x1x64xf32>
    %44 = vector.shape_cast %43 : vector<1x1x64xf32> to vector<1x64xf32>
    %45 = vector.broadcast %44 : vector<1x64xf32> to vector<32x64xf32>
    %46 = arith.addf %42, %45 : vector<32x64xf32>
    %47 = arith.addf %0, %46 : vector<32x64xf32>
    %c1 = arith.constant 1 : index
    %c0_27 = arith.constant 0 : index
    %c0_28 = arith.constant 0 : index
    %48 = vector.load %arg2[%c1, %c0_27, %c0_28] : memref<2x1x64xf32, #tpu.memory_space<vmem>>, vector<1x1x64xf32>
    %49 = vector.shape_cast %48 : vector<1x1x64xf32> to vector<1x64xf32>
    %c1_29 = arith.constant 1 : index
    %c0_30 = arith.constant 0 : index
    %c0_31 = arith.constant 0 : index
    %50 = vector.load %arg3[%c1_29, %c0_30, %c0_31] : memref<2x1x64xf32, #tpu.memory_space<vmem>>, vector<1x1x64xf32>
    %51 = vector.shape_cast %50 : vector<1x1x64xf32> to vector<1x64xf32>
    %cst_32 = arith.constant dense<0.000000e+00> : vector<32xf32>
    %52 = vector.multi_reduction <add>, %47, %cst_32 [1] : vector<32x64xf32> to vector<32xf32>
    %53 = vector.shape_cast %52 : vector<32xf32> to vector<32x1xf32>
    %54 = arith.mulf %47, %47 : vector<32x64xf32>
    %cst_33 = arith.constant dense<0.000000e+00> : vector<32xf32>
    %55 = vector.multi_reduction <add>, %54, %cst_33 [1] : vector<32x64xf32> to vector<32xf32>
    %56 = vector.shape_cast %55 : vector<32xf32> to vector<32x1xf32>
    %cst_34 = arith.constant 1.562500e-02 : f32
    %57 = vector.broadcast %cst_34 : f32 to vector<32x1xf32>
    %58 = arith.mulf %53, %57 : vector<32x1xf32>
    %cst_35 = arith.constant 1.562500e-02 : f32
    %59 = vector.broadcast %cst_35 : f32 to vector<32x1xf32>
    %60 = arith.mulf %56, %59 : vector<32x1xf32>
    %61 = arith.mulf %58, %58 : vector<32x1xf32>
    %62 = arith.subf %60, %61 : vector<32x1xf32>
    %cst_36 = arith.constant 0.000000e+00 : f32
    %63 = vector.broadcast %cst_36 : f32 to vector<32x1xf32>
    %64 = arith.maximumf %62, %63 : vector<32x1xf32>
    %65 = vector.broadcast %58 : vector<32x1xf32> to vector<32x64xf32>
    %66 = arith.subf %47, %65 : vector<32x64xf32>
    %cst_37 = arith.constant 9.99999974E-6 : f32
    %67 = vector.broadcast %cst_37 : f32 to vector<32x1xf32>
    %68 = arith.addf %64, %67 : vector<32x1xf32>
    %69 = math.rsqrt %68 : vector<32x1xf32>
    %70 = vector.broadcast %69 : vector<32x1xf32> to vector<32x64xf32>
    %71 = arith.mulf %66, %70 : vector<32x64xf32>
    %72 = vector.broadcast %49 : vector<1x64xf32> to vector<32x64xf32>
    %73 = arith.mulf %71, %72 : vector<32x64xf32>
    %74 = vector.broadcast %51 : vector<1x64xf32> to vector<32x64xf32>
    %75 = arith.addf %73, %74 : vector<32x64xf32>
    %76 = arith.truncf %75 : vector<32x64xf32> to vector<32x64xbf16>
    %c1_38 = arith.constant 1 : index
    %c0_39 = arith.constant 0 : index
    %c0_40 = arith.constant 0 : index
    %77 = vector.load %arg4[%c1_38, %c0_39, %c0_40] : memref<2x64x64xbf16, #tpu.memory_space<vmem>>, vector<1x64x64xbf16>
    %78 = vector.shape_cast %77 : vector<1x64x64xbf16> to vector<64x64xbf16>
    %cst_41 = arith.constant dense<0.000000e+00> : vector<32x64xf32>
    %79 = tpu.matmul %76, %78, %cst_41 {dimension_numbers = #tpu.dot_dimension_numbers<[1], [0], [0], [1], [0, 0, 1, 1], [], []>} : vector<32x64xbf16>, vector<64x64xbf16>, vector<32x64xf32> -> vector<32x64xf32>
    %c1_42 = arith.constant 1 : index
    %c0_43 = arith.constant 0 : index
    %c0_44 = arith.constant 0 : index
    %80 = vector.load %arg5[%c1_42, %c0_43, %c0_44] : memref<2x1x64xf32, #tpu.memory_space<vmem>>, vector<1x1x64xf32>
    %81 = vector.shape_cast %80 : vector<1x1x64xf32> to vector<1x64xf32>
    %82 = vector.broadcast %81 : vector<1x64xf32> to vector<32x64xf32>
    %83 = arith.addf %79, %82 : vector<32x64xf32>
    %cst_45 = arith.constant 0.000000e+00 : f32
    %84 = vector.broadcast %cst_45 : f32 to vector<32x64xf32>
    %85 = arith.maximumf %83, %84 : vector<32x64xf32>
    %86 = arith.truncf %85 : vector<32x64xf32> to vector<32x64xbf16>
    %c1_46 = arith.constant 1 : index
    %c0_47 = arith.constant 0 : index
    %c0_48 = arith.constant 0 : index
    %87 = vector.load %arg6[%c1_46, %c0_47, %c0_48] : memref<2x64x64xbf16, #tpu.memory_space<vmem>>, vector<1x64x64xbf16>
    %88 = vector.shape_cast %87 : vector<1x64x64xbf16> to vector<64x64xbf16>
    %cst_49 = arith.constant dense<0.000000e+00> : vector<32x64xf32>
    %89 = tpu.matmul %86, %88, %cst_49 {dimension_numbers = #tpu.dot_dimension_numbers<[1], [0], [0], [1], [0, 0, 1, 1], [], []>} : vector<32x64xbf16>, vector<64x64xbf16>, vector<32x64xf32> -> vector<32x64xf32>
    %c1_50 = arith.constant 1 : index
    %c0_51 = arith.constant 0 : index
    %c0_52 = arith.constant 0 : index
    %90 = vector.load %arg7[%c1_50, %c0_51, %c0_52] : memref<2x1x64xf32, #tpu.memory_space<vmem>>, vector<1x1x64xf32>
    %91 = vector.shape_cast %90 : vector<1x1x64xf32> to vector<1x64xf32>
    %92 = vector.broadcast %91 : vector<1x64xf32> to vector<32x64xf32>
    %93 = arith.addf %89, %92 : vector<32x64xf32>
    %94 = arith.addf %47, %93 : vector<32x64xf32>
    %c0_53 = arith.constant 0 : index
    %c0_54 = arith.constant 0 : index
    %95 = vector.load %arg8[%c0_53, %c0_54] : memref<4x64xbf16, #tpu.memory_space<vmem>>, vector<4x64xbf16>
    %c0_55 = arith.constant 0 : index
    %c0_56 = arith.constant 0 : index
    %96 = vector.load %arg9[%c0_55, %c0_56] : memref<16x32xbf16, #tpu.memory_space<vmem>>, vector<16x32xbf16>
    %c0_57 = arith.constant 0 : index
    %c0_58 = arith.constant 0 : index
    %97 = vector.load %arg10[%c0_57, %c0_58] : memref<4x32xf32, #tpu.memory_space<vmem>>, vector<4x32xf32>
    %98 = arith.truncf %94 : vector<32x64xf32> to vector<32x64xbf16>
    %99 = vector.extract_strided_slice %98 {offsets = [0, 0], sizes = [16, 64], strides = [1, 1]} : vector<32x64xbf16> to vector<16x64xbf16>
    %cst_59 = arith.constant dense<0.000000e+00> : vector<4x16xf32>
    %100 = tpu.matmul %95, %99, %cst_59 {dimension_numbers = #tpu.dot_dimension_numbers<[1], [1], [0], [0], [0, 0, 1, 0], [], []>} : vector<4x64xbf16>, vector<16x64xbf16>, vector<4x16xf32> -> vector<4x16xf32>
    %101 = arith.truncf %100 : vector<4x16xf32> to vector<4x16xbf16>
    %cst_60 = arith.constant dense<0.000000e+00> : vector<4x32xf32>
    %102 = tpu.matmul %101, %96, %cst_60 {dimension_numbers = #tpu.dot_dimension_numbers<[1], [0], [0], [1], [0, 0, 1, 1], [], []>} : vector<4x16xbf16>, vector<16x32xbf16>, vector<4x32xf32> -> vector<4x32xf32>
    %103 = arith.addf %102, %97 : vector<4x32xf32>
    %104 = arith.mulf %103, %103 : vector<4x32xf32>
    %105 = vector.shape_cast %104 : vector<4x32xf32> to vector<1x4x32xf32>
    %cst_61 = arith.constant dense<0.000000e+00> : vector<1xf32>
    %106 = vector.multi_reduction <add>, %105, %cst_61 [1, 2] : vector<1x4x32xf32> to vector<1xf32>
    %107 = vector.shape_cast %106 : vector<1xf32> to vector<1x1x1xf32>
    %108 = vector.extract %107[0, 0, 0] : f32 from vector<1x1x1xf32>
    %cst_62 = arith.constant 1.000000e-24 : f32
    %109 = arith.maximumf %108, %cst_62 : f32
    %110 = math.rsqrt %109 : f32
    %111 = vector.broadcast %110 : f32 to vector<4x32xf32>
    %112 = arith.mulf %103, %111 : vector<4x32xf32>
    %c0_63 = arith.constant 0 : index
    %c0_64 = arith.constant 0 : index
    %c0_65 = arith.constant 0 : index
    %113 = vector.load %arg11[%c0_63, %c0_64, %c0_65] : memref<2x4x32xf32, #tpu.memory_space<vmem>>, vector<1x4x32xf32>
    %114 = vector.shape_cast %113 : vector<1x4x32xf32> to vector<4x32xf32>
    %115 = vector.shape_cast %112 : vector<4x32xf32> to vector<1x4x32xf32>
    tpu.vector_store %arg11[%c0_63, %c0_64, %c0_65], %115 {strides = array<i32>} : memref<2x4x32xf32, #tpu.memory_space<vmem>>, vector<1x4x32xf32>,
    %116 = vector.extract_strided_slice %98 {offsets = [16, 0], sizes = [16, 64], strides = [1, 1]} : vector<32x64xbf16> to vector<16x64xbf16>
    %cst_66 = arith.constant dense<0.000000e+00> : vector<4x16xf32>
    %117 = tpu.matmul %95, %116, %cst_66 {dimension_numbers = #tpu.dot_dimension_numbers<[1], [1], [0], [0], [0, 0, 1, 0], [], []>} : vector<4x64xbf16>, vector<16x64xbf16>, vector<4x16xf32> -> vector<4x16xf32>
    %118 = arith.truncf %117 : vector<4x16xf32> to vector<4x16xbf16>
    %cst_67 = arith.constant dense<0.000000e+00> : vector<4x32xf32>
    %119 = tpu.matmul %118, %96, %cst_67 {dimension_numbers = #tpu.dot_dimension_numbers<[1], [0], [0], [1], [0, 0, 1, 1], [], []>} : vector<4x16xbf16>, vector<16x32xbf16>, vector<4x32xf32> -> vector<4x32xf32>
    %120 = arith.addf %119, %97 : vector<4x32xf32>
    %121 = arith.mulf %120, %120 : vector<4x32xf32>
    %122 = vector.shape_cast %121 : vector<4x32xf32> to vector<1x4x32xf32>
    %cst_68 = arith.constant dense<0.000000e+00> : vector<1xf32>
    %123 = vector.multi_reduction <add>, %122, %cst_68 [1, 2] : vector<1x4x32xf32> to vector<1xf32>
    %124 = vector.shape_cast %123 : vector<1xf32> to vector<1x1x1xf32>
    %125 = vector.extract %124[0, 0, 0] : f32 from vector<1x1x1xf32>
    %cst_69 = arith.constant 1.000000e-24 : f32
    %126 = arith.maximumf %125, %cst_69 : f32
    %127 = math.rsqrt %126 : f32
    %128 = vector.broadcast %127 : f32 to vector<4x32xf32>
    %129 = arith.mulf %120, %128 : vector<4x32xf32>
    %c1_70 = arith.constant 1 : index
    %c0_71 = arith.constant 0 : index
    %c0_72 = arith.constant 0 : index
    %130 = vector.load %arg11[%c1_70, %c0_71, %c0_72] : memref<2x4x32xf32, #tpu.memory_space<vmem>>, vector<1x4x32xf32>
    %131 = vector.shape_cast %130 : vector<1x4x32xf32> to vector<4x32xf32>
    %132 = vector.shape_cast %129 : vector<4x32xf32> to vector<1x4x32xf32>
    tpu.vector_store %arg11[%c1_70, %c0_71, %c0_72], %132 {strides = array<i32>} : memref<2x4x32xf32, #tpu.memory_space<vmem>>, vector<1x4x32xf32>,
    return
  }
  func.func @transform_0(%arg0: i32) -> (i32, i32) {
    %c0_i32 = arith.constant 0 : i32
    %c0_i32_0 = arith.constant 0 : i32
    return %arg0, %c0_i32 : i32, i32
  }
  func.func @transform_1(%arg0: i32) -> (i32, i32, i32) {
    %c0_i32 = arith.constant 0 : i32
    %c0_i32_0 = arith.constant 0 : i32
    %c0_i32_1 = arith.constant 0 : i32
    %c0_i32_2 = arith.constant 0 : i32
    return %c0_i32, %c0_i32_0, %c0_i32_1 : i32, i32, i32
  }
  func.func @transform_2(%arg0: i32) -> (i32, i32, i32) {
    %c0_i32 = arith.constant 0 : i32
    %c0_i32_0 = arith.constant 0 : i32
    %c0_i32_1 = arith.constant 0 : i32
    %c0_i32_2 = arith.constant 0 : i32
    return %c0_i32, %c0_i32_0, %c0_i32_1 : i32, i32, i32
  }
  func.func @transform_3(%arg0: i32) -> (i32, i32, i32) {
    %c0_i32 = arith.constant 0 : i32
    %c0_i32_0 = arith.constant 0 : i32
    %c0_i32_1 = arith.constant 0 : i32
    %c0_i32_2 = arith.constant 0 : i32
    return %c0_i32, %c0_i32_0, %c0_i32_1 : i32, i32, i32
  }
  func.func @transform_4(%arg0: i32) -> (i32, i32, i32) {
    %c0_i32 = arith.constant 0 : i32
    %c0_i32_0 = arith.constant 0 : i32
    %c0_i32_1 = arith.constant 0 : i32
    %c0_i32_2 = arith.constant 0 : i32
    return %c0_i32, %c0_i32_0, %c0_i32_1 : i32, i32, i32
  }
  func.func @transform_5(%arg0: i32) -> (i32, i32, i32) {
    %c0_i32 = arith.constant 0 : i32
    %c0_i32_0 = arith.constant 0 : i32
    %c0_i32_1 = arith.constant 0 : i32
    %c0_i32_2 = arith.constant 0 : i32
    return %c0_i32, %c0_i32_0, %c0_i32_1 : i32, i32, i32
  }
  func.func @transform_6(%arg0: i32) -> (i32, i32, i32) {
    %c0_i32 = arith.constant 0 : i32
    %c0_i32_0 = arith.constant 0 : i32
    %c0_i32_1 = arith.constant 0 : i32
    %c0_i32_2 = arith.constant 0 : i32
    return %c0_i32, %c0_i32_0, %c0_i32_1 : i32, i32, i32
  }
  func.func @transform_7(%arg0: i32) -> (i32, i32) {
    %c0_i32 = arith.constant 0 : i32
    %c0_i32_0 = arith.constant 0 : i32
    %c0_i32_1 = arith.constant 0 : i32
    return %c0_i32, %c0_i32_0 : i32, i32
  }
  func.func @transform_8(%arg0: i32) -> (i32, i32) {
    %c0_i32 = arith.constant 0 : i32
    %c0_i32_0 = arith.constant 0 : i32
    %c0_i32_1 = arith.constant 0 : i32
    return %c0_i32, %c0_i32_0 : i32, i32
  }
  func.func @transform_9(%arg0: i32) -> (i32, i32) {
    %c0_i32 = arith.constant 0 : i32
    %c0_i32_0 = arith.constant 0 : i32
    %c0_i32_1 = arith.constant 0 : i32
    return %c0_i32, %c0_i32_0 : i32, i32
  }
  func.func @transform_10(%arg0: i32) -> (i32, i32, i32) {
    %c0_i32 = arith.constant 0 : i32
    %c0_i32_0 = arith.constant 0 : i32
    %c0_i32_1 = arith.constant 0 : i32
    return %arg0, %c0_i32, %c0_i32_0 : i32, i32, i32
  }
}

</mosaic_0001>

<llo_original>
// kernel: tpu_custom_call.1
$region0: #{tpu_custom_call.1}
  #allocation0 [shape = 'u32[]', space=smem, size = 0x4, offset = 0x4, fixed_abs, tag = 'smem constant byte address 0x4 - core index']
  #allocation1 [shape = 'u32[72,128]{1,0:T(1,128)}', space=vmem, size = 0x9000, scoped, tag = 'internal scratch']
  %s0 = inlined_call_operand.hbm [shape: f32[32,64], index: 0, kind: input, shape index: {}]
  %s1 = inlined_call_operand.hbm [shape: f32[2,1,64], index: 1, kind: input, shape index: {}]
  %s2 = inlined_call_operand.hbm [shape: f32[2,1,64], index: 2, kind: input, shape index: {}]
  %s3 = inlined_call_operand.hbm [shape: bf16[2,64,64], index: 3, kind: input, shape index: {}]
  %s4 = inlined_call_operand.vmem [shape: f32[2,1,64], index: 4, kind: input, shape index: {}]
  %s5 = inlined_call_operand.hbm [shape: bf16[2,64,64], index: 5, kind: input, shape index: {}]
  %s6 = inlined_call_operand.hbm [shape: f32[2,1,64], index: 6, kind: input, shape index: {}]
  %s7 = inlined_call_operand.hbm [shape: bf16[4,64], index: 7, kind: input, shape index: {}]
  %s8 = inlined_call_operand.hbm [shape: bf16[16,32], index: 8, kind: input, shape index: {}]
  %s9 = inlined_call_operand.vmem [shape: f32[4,32], index: 9, kind: input, shape index: {}]
  %s10 = inlined_call_operand.hbm [shape: f32[2,4,32], index: 10, kind: output, shape index: {}]
  %s11 = sld [smem:[#allocation0]]
  $region82: #{tpu_custom_call.1} parent=0
    _
  %s13 = ssub.s32 1, %s11
  %s14 = scalar_select 0, %s13, %s11
  $region1: #{tpu_custom_call.1} parent=0
    #allocation2 [shape = 'u8[16384]{0}', space=vmem, size = 0x4000, scoped, tag = 'input window, operand 0, single buffered']
    #allocation3 [shape = 's32[1]{0}', space=sflag, size = 0x4, scoped, tag = 'scoped memory for tpu_custom_call.1']
    #allocation4 [shape = 's32[1]{0}', space=sflag, size = 0x4, scoped, tag = 'scoped memory for tpu_custom_call.1']
    #allocation5 [shape = 'u8[1024]{0}', space=vmem, size = 0x400, scoped, tag = 'input window, operand 1, single buffered']
    #allocation6 [shape = 's32[1]{0}', space=sflag, size = 0x4, scoped, tag = 'scoped memory for tpu_custom_call.1']
    #allocation7 [shape = 'u8[1024]{0}', space=vmem, size = 0x400, scoped, tag = 'input window, operand 2, single buffered']
    #allocation8 [shape = 'u8[32768]{0}', space=vmem, size = 0x8000, scoped, tag = 'input window, operand 3, single buffered']
    #allocation9 [shape = 's32[1]{0}', space=sflag, size = 0x4, scoped, tag = 'scoped memory for tpu_custom_call.1']
    #allocation10 [shape = 'u8[32768]{0}', space=vmem, size = 0x8000, scoped, tag = 'input window, operand 5, single buffered']
    #allocation11 [shape = 'u8[1024]{0}', space=vmem, size = 0x400, scoped, tag = 'input window, operand 6, single buffered']
    #allocation12 [shape = 's32[1]{0}', space=sflag, size = 0x4, scoped, tag = 'scoped memory for tpu_custom_call.1']
    #allocation13 [shape = 'u8[1024]{0}', space=vmem, size = 0x400, scoped, tag = 'input window, operand 7, single buffered']
    #allocation14 [shape = 'u8[4096]{0}', space=vmem, size = 0x1000, scoped, tag = 'input window, operand 8, single buffered']
    #allocation15 [shape = 's32[1]{0}', space=sflag, size = 0x4, scoped, tag = 'scoped memory for tpu_custom_call.1']
    #allocation16 [shape = 'u8[4096]{0}', space=vmem, size = 0x1000, scoped, tag = 'output window, operand 0, single buffered']
    %15 = vsyncpa [#allocation3], 0
    %16 = vsyncpa [#allocation6], 0
    %17 = vsyncpa [#allocation9], 0
    %18 = vsyncpa [#allocation12], 0
    %19 = vsyncpa [#allocation15], 0
    %20 = vsyncpa [#allocation4], 0
    // Predicated region
    $region2: #{tpu_custom_call.1} parent=1 // pred_check
      _
    $region3: #{tpu_custom_call.1} parent=1 // pred_check_branch
      %22 = sbr.rel (0) target = $region5
    $region4: #{tpu_custom_call.1} parent=1 // pred_region
      %24 = vsyncadd [#allocation3], 0
      %s25 = sshll.u32 %s0, 4
      %s26 = int_to_ptr.hbm [resolvable:$true] %s25
      %s27 = sshll.u32 [#allocation2], 4
      %s28 = int_to_ptr.vmem [resolvable:$true] %s27
      %33 = dma.hbm_to_vmem [thread:$0]  %s26, 512, %s28, [#allocation3], 128, 128, 8
    $region5: #{tpu_custom_call.1} parent=1 // pred_fallthru
      _
    // Predicated region
    $region6: #{tpu_custom_call.1} parent=1 // pred_check
      _
    $region7: #{tpu_custom_call.1} parent=1 // pred_check_branch
      %35 = sbr.rel (0) target = $region9
    $region8: #{tpu_custom_call.1} parent=1 // pred_region
      %37 = vsyncadd [#allocation6], 0
      %s38 = sshll.u32 %s1, 4
      %s39 = int_to_ptr.hbm [resolvable:$true] %s38
      %s40 = sshll.u32 [#allocation5], 4
      %s41 = int_to_ptr.vmem [resolvable:$true] %s40
      %46 = dma.hbm_to_vmem [thread:$0]  %s39, 32, %s41, [#allocation6], 16, 16, 1
    $region9: #{tpu_custom_call.1} parent=1 // pred_fallthru
      _
    // Predicated region
    $region10: #{tpu_custom_call.1} parent=1 // pred_check
      _
    $region11: #{tpu_custom_call.1} parent=1 // pred_check_branch
      %48 = sbr.rel (0) target = $region13
    $region12: #{tpu_custom_call.1} parent=1 // pred_region
      %50 = vsyncadd [#allocation6], 0
      %s51 = sshll.u32 %s2, 4
      %s52 = int_to_ptr.hbm [resolvable:$true] %s51
      %s53 = sshll.u32 [#allocation7], 4
      %s54 = int_to_ptr.vmem [resolvable:$true] %s53
      %59 = dma.hbm_to_vmem [thread:$0]  %s52, 32, %s54, [#allocation6], 16, 16, 1
    $region13: #{tpu_custom_call.1} parent=1 // pred_fallthru
      _
    // Predicated region
    $region14: #{tpu_custom_call.1} parent=1 // pred_check
      _
    $region15: #{tpu_custom_call.1} parent=1 // pred_check_branch
      %61 = sbr.rel (0) target = $region17
    $region16: #{tpu_custom_call.1} parent=1 // pred_region
      %63 = vsyncadd [#allocation9], 0
      %s64 = sshll.u32 %s3, 4
      %s65 = int_to_ptr.hbm [resolvable:$true] %s64
      %s66 = sshll.u32 [#allocation8], 4
      %s67 = int_to_ptr.vmem [resolvable:$true] %s66
      %72 = dma.hbm_to_vmem [thread:$0]  %s65, 1024, %s67, [#allocation9], 64, 64, 4
    $region17: #{tpu_custom_call.1} parent=1 // pred_fallthru
      _
    // Predicated region
    $region18: #{tpu_custom_call.1} parent=1 // pred_check
      _
    $region19: #{tpu_custom_call.1} parent=1 // pred_check_branch
      %74 = sbr.rel (0) target = $region21
    $region20: #{tpu_custom_call.1} parent=1 // pred_region
      _
    $region21: #{tpu_custom_call.1} parent=1 // pred_fallthru
      _
    // Predicated region
    $region22: #{tpu_custom_call.1} parent=1 // pred_check
      _
    $region23: #{tpu_custom_call.1} parent=1 // pred_check_branch
      %76 = sbr.rel (0) target = $region25
    $region24: #{tpu_custom_call.1} parent=1 // pred_region
      %78 = vsyncadd [#allocation9], 0
      %s79 = sshll.u32 %s5, 4
      %s80 = int_to_ptr.hbm [resolvable:$true] %s79
      %s81 = sshll.u32 [#allocation10], 4
      %s82 = int_to_ptr.vmem [resolvable:$true] %s81
      %87 = dma.hbm_to_vmem [thread:$0]  %s80, 1024, %s82, [#allocation9], 64, 64, 4
    $region25: #{tpu_custom_call.1} parent=1 // pred_fallthru
      _
    // Predicated region
    $region26: #{tpu_custom_call.1} parent=1 // pred_check
      _
    $region27: #{tpu_custom_call.1} parent=1 // pred_check_branch
      %89 = sbr.rel (0) target = $region29
    $region28: #{tpu_custom_call.1} parent=1 // pred_region
      %91 = vsyncadd [#allocation12], 0
      %s92 = sshll.u32 %s6, 4
      %s93 = int_to_ptr.hbm [resolvable:$true] %s92
      %s94 = sshll.u32 [#allocation11], 4
      %s95 = int_to_ptr.vmem [resolvable:$true] %s94
      %100 = dma.hbm_to_vmem [thread:$0]  %s93, 32, %s95, [#allocation12], 16, 16, 1
    $region29: #{tpu_custom_call.1} parent=1 // pred_fallthru
      _
    // Predicated region
    $region30: #{tpu_custom_call.1} parent=1 // pred_check
      _
    $region31: #{tpu_custom_call.1} parent=1 // pred_check_branch
      %102 = sbr.rel (0) target = $region33
    $region32: #{tpu_custom_call.1} parent=1 // pred_region
      %104 = vsyncadd [#allocation12], 0
      %s106 = sshll.u32 %s7, 4
      %s107 = int_to_ptr.hbm [resolvable:$true] %s106
      %s108 = sshll.u32 [#allocation13], 4
      %s109 = int_to_ptr.vmem [resolvable:$true] %s108
      %111 = dma.hbm_to_vmem [thread:$0]  %s107, 32, %s109, [#allocation12]
    $region33: #{tpu_custom_call.1} parent=1 // pred_fallthru
      _
    // Predicated region
    $region34: #{tpu_custom_call.1} parent=1 // pred_check
      _
    $region35: #{tpu_custom_call.1} parent=1 // pred_check_branch
      %113 = sbr.rel (0) target = $region37
    $region36: #{tpu_custom_call.1} parent=1 // pred_region
      %115 = vsyncadd [#allocation15], 0
      %s116 = sshll.u32 %s8, 4
      %s117 = int_to_ptr.hbm [resolvable:$true] %s116
      %s118 = sshll.u32 [#allocation14], 4
      %s119 = int_to_ptr.vmem [resolvable:$true] %s118
      %124 = dma.hbm_to_vmem [thread:$0]  %s117, 128, %s119, [#allocation15], 64, 64, 4
    $region37: #{tpu_custom_call.1} parent=1 // pred_fallthru
      _
    // Predicated region
    $region38: #{tpu_custom_call.1} parent=1 // pred_check
      _
    $region39: #{tpu_custom_call.1} parent=1 // pred_check_branch
      %126 = sbr.rel (0) target = $region41
    $region40: #{tpu_custom_call.1} parent=1 // pred_region
      _
    $region41: #{tpu_custom_call.1} parent=1 // pred_fallthru
      _
    // Predicated region
    $region42: #{tpu_custom_call.1} parent=1 // pred_check
      _
    $region43: #{tpu_custom_call.1} parent=1 // pred_check_branch
      %128 = sbr.rel (0) target = $region45
    $region44: #{tpu_custom_call.1} parent=1 // pred_region
      %130 = dma.done [#allocation3], 512
    $region45: #{tpu_custom_call.1} parent=1 // pred_fallthru
      _
    // Predicated region
    $region46: #{tpu_custom_call.1} parent=1 // pred_check
      _
    $region47: #{tpu_custom_call.1} parent=1 // pred_check_branch
      %132 = sbr.rel (0) target = $region49
    $region48: #{tpu_custom_call.1} parent=1 // pred_region
      %134 = dma.done [#allocation6], 32
    $region49: #{tpu_custom_call.1} parent=1 // pred_fallthru
      _
    // Predicated region
    $region50: #{tpu_custom_call.1} parent=1 // pred_check
      _
    $region51: #{tpu_custom_call.1} parent=1 // pred_check_branch
      %136 = sbr.rel (0) target = $region53
    $region52: #{tpu_custom_call.1} parent=1 // pred_region
      %138 = dma.done [#allocation6], 32
    $region53: #{tpu_custom_call.1} parent=1 // pred_fallthru
      _
    // Predicated region
    $region54: #{tpu_custom_call.1} parent=1 // pred_check
      _
    $region55: #{tpu_custom_call.1} parent=1 // pred_check_branch
      %140 = sbr.rel (0) target = $region57
    $region56: #{tpu_custom_call.1} parent=1 // pred_region
      %142 = dma.done [#allocation9], 1024
    $region57: #{tpu_custom_call.1} parent=1 // pred_fallthru
      _
    // Predicated region
    $region58: #{tpu_custom_call.1} parent=1 // pred_check
      _
    $region59: #{tpu_custom_call.1} parent=1 // pred_check_branch
      %144 = sbr.rel (0) target = $region61
    $region60: #{tpu_custom_call.1} parent=1 // pred_region
      %146 = dma.done [#allocation9], 1024
    $region61: #{tpu_custom_call.1} parent=1 // pred_fallthru
      _
    // Predicated region
    $region62: #{tpu_custom_call.1} parent=1 // pred_check
      _
    $region63: #{tpu_custom_call.1} parent=1 // pred_check_branch
      %148 = sbr.rel (0) target = $region65
    $region64: #{tpu_custom_call.1} parent=1 // pred_region
      %150 = dma.done [#allocation12], 32
    $region65: #{tpu_custom_call.1} parent=1 // pred_fallthru
      _
    // Predicated region
    $region66: #{tpu_custom_call.1} parent=1 // pred_check
      _
    $region67: #{tpu_custom_call.1} parent=1 // pred_check_branch
      %152 = sbr.rel (0) target = $region69
    $region68: #{tpu_custom_call.1} parent=1 // pred_region
      %154 = dma.done [#allocation12], 32
    $region69: #{tpu_custom_call.1} parent=1 // pred_fallthru
      _
    // Predicated region
    $region70: #{tpu_custom_call.1} parent=1 // pred_check
      _
    $region71: #{tpu_custom_call.1} parent=1 // pred_check_branch
      %156 = sbr.rel (0) target = $region73
    $region72: #{tpu_custom_call.1} parent=1 // pred_region
      %158 = dma.done [#allocation15], 128
    $region73: #{tpu_custom_call.1} parent=1 // pred_fallthru
      _
    %v160 = vld [vmem:[#allocation2] sm:$0xff]
    %v161 = vld [vmem:[#allocation2 + $0x8] sm:$0xff]
    %v162 = vld [vmem:[#allocation2 + $0x10] sm:$0xff]
    %v163 = vld [vmem:[#allocation2 + $0x18] sm:$0xff]
    %v164 = vld [vmem:[#allocation5] sm:$0x1]
    %v165 = vld [vmem:[#allocation7] sm:$0x1]
    %vm166 = vcmask 523264
    %v167 = vsel %vm166, %v160, 0.0
    %168 = vadd.xlane.f32.xlu0 %v167
    %v169 = vpop.xlane.xlu0 %168
    %v170 = vsel %vm166, %v161, 0.0
    %171 = vadd.xlane.f32.xlu0 %v170
    %v172 = vpop.xlane.xlu0 %171
    %v173 = vsel %vm166, %v162, 0.0
    %174 = vadd.xlane.f32.xlu0 %v173
    %v175 = vpop.xlane.xlu0 %174
    %v176 = vsel %vm166, %v163, 0.0
    %177 = vadd.xlane.f32.xlu0 %v176
    %v178 = vpop.xlane.xlu0 %177
    %v179 = vmul.f32 %v160, %v160
    %v180 = vmul.f32 %v161, %v161
    %v181 = vmul.f32 %v162, %v162
    %v182 = vmul.f32 %v163, %v163
    %v183 = vsel %vm166, %v179, 0.0
    %184 = vadd.xlane.f32.xlu0 %v183
    %v185 = vpop.xlane.xlu0 %184
    %v186 = vsel %vm166, %v180, 0.0
    %187 = vadd.xlane.f32.xlu0 %v186
    %v188 = vpop.xlane.xlu0 %187
    %v189 = vsel %vm166, %v181, 0.0
    %190 = vadd.xlane.f32.xlu0 %v189
    %v191 = vpop.xlane.xlu0 %190
    %v192 = vsel %vm166, %v182, 0.0
    %193 = vadd.xlane.f32.xlu0 %v192
    %v194 = vpop.xlane.xlu0 %193
    %v195 = vmul.f32 %v169, 0.015625
    %v196 = vmul.f32 %v172, 0.015625
    %v197 = vmul.f32 %v175, 0.015625
    %v198 = vmul.f32 %v178, 0.015625
    %v199 = vmul.f32 %v185, 0.015625
    %v200 = vmul.f32 %v188, 0.015625
    %v201 = vmul.f32 %v191, 0.015625
    %v202 = vmul.f32 %v194, 0.015625
    %v203 = vmul.f32 %v195, %v195
    %v204 = vmul.f32 %v196, %v196
    %v205 = vmul.f32 %v197, %v197
    %v206 = vmul.f32 %v198, %v198
    %v207 = vsub.f32 %v199, %v203
    %v208 = vsub.f32 %v200, %v204
    %v209 = vsub.f32 %v201, %v205
    %v210 = vsub.f32 %v202, %v206
    %v211 = vmax.f32 %v207, 0.0
    %v212 = vmax.f32 %v208, 0.0
    %v213 = vmax.f32 %v209, 0.0
    %v214 = vmax.f32 %v210, 0.0
    %v215 = vsub.f32 %v160, %v195
    %v216 = vsub.f32 %v161, %v196
    %v217 = vsub.f32 %v162, %v197
    %v218 = vsub.f32 %v163, %v198
    %v219 = vadd.f32 %v211, 1e-05
    %v220 = vadd.f32 %v212, 1e-05
    %v221 = vadd.f32 %v213, 1e-05
    %v222 = vadd.f32 %v214, 1e-05
    %v223 = vrsqrt.pop %v219
    %v224 = vmul.f32 %v223, %v219
    %v225 = vmul.f32 %v224, %v223
    %v226 = vmul.f32 0.5, %v225
    %v227 = vsub.f32 1.5, %v226
    %v228 = vmul.f32 %v223, %v227
    %vm229 = vweird.f32 %v219
    %vm230 = vweird.f32 %v223
    %vm231 = vmor %vm229, %vm230
    %v232 = vsel %vm231, %v223, %v228
    %v233 = vrsqrt.pop %v220
    %v234 = vmul.f32 %v233, %v220
    %v235 = vmul.f32 %v234, %v233
    %v236 = vmul.f32 0.5, %v235
    %v237 = vsub.f32 1.5, %v236
    %v238 = vmul.f32 %v233, %v237
    %vm239 = vweird.f32 %v220
    %vm240 = vweird.f32 %v233
    %vm241 = vmor %vm239, %vm240
    %v242 = vsel %vm241, %v233, %v238
    %v243 = vrsqrt.pop %v221
    %v244 = vmul.f32 %v243, %v221
    %v245 = vmul.f32 %v244, %v243
    %v246 = vmul.f32 0.5, %v245
    %v247 = vsub.f32 1.5, %v246
    %v248 = vmul.f32 %v243, %v247
    %vm249 = vweird.f32 %v221
    %vm250 = vweird.f32 %v243
    %vm251 = vmor %vm249, %vm250
    %v252 = vsel %vm251, %v243, %v248
    %v253 = vrsqrt.pop %v222
    %v254 = vmul.f32 %v253, %v222
    %v255 = vmul.f32 %v254, %v253
    %v256 = vmul.f32 0.5, %v255
    %v257 = vsub.f32 1.5, %v256
    %v258 = vmul.f32 %v253, %v257
    %vm259 = vweird.f32 %v222
    %vm260 = vweird.f32 %v253
    %vm261 = vmor %vm259, %vm260
    %v262 = vsel %vm261, %v253, %v258
    %v263 = vmul.f32 %v215, %v232
    %v264 = vmul.f32 %v216, %v242
    %v265 = vmul.f32 %v217, %v252
    %v266 = vmul.f32 %v218, %v262
    %v268 = vperm.slane %v164, 0
    %v270 = vmul.f32 %v263, %v268
    %v271 = vmul.f32 %v264, %v268
    %v272 = vmul.f32 %v265, %v268
    %v273 = vmul.f32 %v266, %v268
    %v275 = vperm.slane %v165, 0
    %v277 = vadd.f32 %v270, %v275
    %v278 = vadd.f32 %v271, %v275
    %v279 = vadd.f32 %v272, %v275
    %v280 = vadd.f32 %v273, %v275
    %v281 = vpack.c.bf16 %v278, %v277
    %v282 = vpack.c.bf16 %v280, %v279
    %v283 = vld [vmem:[#allocation8] sm:$0xf]
    %v284 = vld [vmem:[#allocation8 + $0x4] sm:$0xf]
    %v285 = vld [vmem:[#allocation8 + $0x8] sm:$0xf]
    %v286 = vld [vmem:[#allocation8 + $0xc] sm:$0xf]
    %v287 = vld [vmem:[#allocation8 + $0x10] sm:$0xf]
    %v288 = vld [vmem:[#allocation8 + $0x14] sm:$0xf]
    %v289 = vld [vmem:[#allocation8 + $0x18] sm:$0xf]
    %v290 = vld [vmem:[#allocation8 + $0x1c] sm:$0xf]
    %v291 = vld [vmem:[%s4] sm:$0x1]
    %v293 = vperm.slane %v291, 0
    %v303 = vunpack.c.l.b16 %v283
    %v304 = vunpack.c.l.b16 %v284
    %v305 = vunpack.c.l.b16 %v285
    %v306 = vunpack.c.l.b16 %v286
    %v307 = vunpack.c.l.b16 %v287
    %v308 = vunpack.c.l.b16 %v288
    %v309 = vunpack.c.l.b16 %v289
    %v310 = vunpack.c.l.b16 %v290
    %v311 = vpack.c.b16 %v304, %v303
    %v312 = vpack.c.b16 %v306, %v305
    %v313 = vpack.c.b16 %v308, %v307
    %v314 = vpack.c.b16 %v310, %v309
    %v320 = vsel %vm166, %v281, 0
    %v323 = vsel %vm166, %v282, 0
    %325 = vmatpush.bf16.msra.mxu0 0
    %326 = vmatpush.bf16.msra.mxu0 0
    %327 = vmatpush.bf16.msra.mxu0 0
    %328 = vmatpush.bf16.msra.mxu0 0
    %329 = vmatpush.bf16.msra.mxu0 %v314
    %330 = vmatpush.bf16.msra.mxu0 %v313
    %331 = vmatpush.bf16.msra.mxu0 %v312
    %332 = vmatpush.bf16.msra.mxu0 %v311
    %333 = vmatmul.bf16.gmra.mxu0 %v320
    %v334 = vpop.f32.mrf.mxu0
    %v335 = vadd.f32 %v293, %v334
    %v336 = vpop.f32.mrf.mxu0
    %v337 = vadd.f32 %v293, %v336
    %338 = vmatmul.bf16.gmra.mxu0 %v323
    %v339 = vpop.f32.mrf.mxu0
    %v340 = vadd.f32 %v293, %v339
    %v341 = vpop.f32.mrf.mxu0
    %v342 = vadd.f32 %v293, %v341
    %343 = vdwg.mxu0
    %v344 = vmax.f32 %v335, 0.0
    %v345 = vmax.f32 %v337, 0.0
    %v346 = vmax.f32 %v340, 0.0
    %v347 = vmax.f32 %v342, 0.0
    %v348 = vpack.c.bf16 %v345, %v344
    %v349 = vpack.c.bf16 %v347, %v346
    %v350 = vld [vmem:[#allocation10] sm:$0xf]
    %v351 = vld [vmem:[#allocation10 + $0x4] sm:$0xf]
    %v352 = vld [vmem:[#allocation10 + $0x8] sm:$0xf]
    %v353 = vld [vmem:[#allocation10 + $0xc] sm:$0xf]
    %v354 = vld [vmem:[#allocation10 + $0x10] sm:$0xf]
    %v355 = vld [vmem:[#allocation10 + $0x14] sm:$0xf]
    %v356 = vld [vmem:[#allocation10 + $0x18] sm:$0xf]
    %v357 = vld [vmem:[#allocation10 + $0x1c] sm:$0xf]
    %v358 = vld [vmem:[#allocation11] sm:$0x1]
    %v360 = vperm.slane %v358, 0
    %v370 = vunpack.c.l.b16 %v350
    %v371 = vunpack.c.l.b16 %v351
    %v372 = vunpack.c.l.b16 %v352
    %v373 = vunpack.c.l.b16 %v353
    %v374 = vunpack.c.l.b16 %v354
    %v375 = vunpack.c.l.b16 %v355
    %v376 = vunpack.c.l.b16 %v356
    %v377 = vunpack.c.l.b16 %v357
    %v378 = vpack.c.b16 %v371, %v370
    %v379 = vpack.c.b16 %v373, %v372
    %v380 = vpack.c.b16 %v375, %v374
    %v381 = vpack.c.b16 %v377, %v376
    %v387 = vsel %vm166, %v348, 0
    %v390 = vsel %vm166, %v349, 0
    %392 = vmatpush.bf16.msra.mxu0 0
    %393 = vmatpush.bf16.msra.mxu0 0
    %394 = vmatpush.bf16.msra.mxu0 0
    %395 = vmatpush.bf16.msra.mxu0 0
    %396 = vmatpush.bf16.msra.mxu0 %v381
    %397 = vmatpush.bf16.msra.mxu0 %v380
    %398 = vmatpush.bf16.msra.mxu0 %v379
    %399 = vmatpush.bf16.msra.mxu0 %v378
    %400 = vmatmul.bf16.gmra.mxu0 %v387
    %v401 = vpop.f32.mrf.mxu0
    %v402 = vadd.f32 %v360, %v401
    %v403 = vpop.f32.mrf.mxu0
    %v404 = vadd.f32 %v360, %v403
    %405 = vmatmul.bf16.gmra.mxu0 %v390
    %v406 = vpop.f32.mrf.mxu0
    %v407 = vadd.f32 %v360, %v406
    %v408 = vpop.f32.mrf.mxu0
    %v409 = vadd.f32 %v360, %v408
    %410 = vdwg.mxu0
    %v411 = vadd.f32 %v160, %v402
    %v412 = vadd.f32 %v161, %v404
    %v413 = vadd.f32 %v162, %v407
    %v414 = vadd.f32 %v163, %v409
    %s415 = scalar_lea.vmem [#allocation5], 1
    %v416 = vld [vmem:[%s415] sm:$0x1]
    %s417 = scalar_lea.vmem [#allocation7], 1
    %v418 = vld [vmem:[%s417] sm:$0x1]
    %v419 = vsel %vm166, %v411, 0.0
    %420 = vadd.xlane.f32.xlu0 %v419
    %v421 = vpop.xlane.xlu0 %420
    %v422 = vsel %vm166, %v412, 0.0
    %423 = vadd.xlane.f32.xlu0 %v422
    %v424 = vpop.xlane.xlu0 %423
    %v425 = vsel %vm166, %v413, 0.0
    %426 = vadd.xlane.f32.xlu0 %v425
    %v427 = vpop.xlane.xlu0 %426
    %v428 = vsel %vm166, %v414, 0.0
    %429 = vadd.xlane.f32.xlu0 %v428
    %v430 = vpop.xlane.xlu0 %429
    %v431 = vmul.f32 %v411, %v411
    %v432 = vmul.f32 %v412, %v412
    %v433 = vmul.f32 %v413, %v413
    %v434 = vmul.f32 %v414, %v414
    %v435 = vsel %vm166, %v431, 0.0
    %436 = vadd.xlane.f32.xlu0 %v435
    %v437 = vpop.xlane.xlu0 %436
    %v438 = vsel %vm166, %v432, 0.0
    %439 = vadd.xlane.f32.xlu0 %v438
    %v440 = vpop.xlane.xlu0 %439
    %v441 = vsel %vm166, %v433, 0.0
    %442 = vadd.xlane.f32.xlu0 %v441
    %v443 = vpop.xlane.xlu0 %442
    %v444 = vsel %vm166, %v434, 0.0
    %445 = vadd.xlane.f32.xlu0 %v444
    %v446 = vpop.xlane.xlu0 %445
    %v447 = vmul.f32 %v421, 0.015625
    %v448 = vmul.f32 %v424, 0.015625
    %v449 = vmul.f32 %v427, 0.015625
    %v450 = vmul.f32 %v430, 0.015625
    %v451 = vmul.f32 %v437, 0.015625
    %v452 = vmul.f32 %v440, 0.015625
    %v453 = vmul.f32 %v443, 0.015625
    %v454 = vmul.f32 %v446, 0.015625
    %v455 = vmul.f32 %v447, %v447
    %v456 = vmul.f32 %v448, %v448
    %v457 = vmul.f32 %v449, %v449
    %v458 = vmul.f32 %v450, %v450
    %v459 = vsub.f32 %v451, %v455
    %v460 = vsub.f32 %v452, %v456
    %v461 = vsub.f32 %v453, %v457
    %v462 = vsub.f32 %v454, %v458
    %v463 = vmax.f32 %v459, 0.0
    %v464 = vmax.f32 %v460, 0.0
    %v465 = vmax.f32 %v461, 0.0
    %v466 = vmax.f32 %v462, 0.0
    %v467 = vsub.f32 %v411, %v447
    %v468 = vsub.f32 %v412, %v448
    %v469 = vsub.f32 %v413, %v449
    %v470 = vsub.f32 %v414, %v450
    %v471 = vadd.f32 %v463, 1e-05
    %v472 = vadd.f32 %v464, 1e-05
    %v473 = vadd.f32 %v465, 1e-05
    %v474 = vadd.f32 %v466, 1e-05
    %v475 = vrsqrt.pop %v471
    %v476 = vmul.f32 %v475, %v471
    %v477 = vmul.f32 %v476, %v475
    %v478 = vmul.f32 0.5, %v477
    %v479 = vsub.f32 1.5, %v478
    %v480 = vmul.f32 %v475, %v479
    %vm481 = vweird.f32 %v471
    %vm482 = vweird.f32 %v475
    %vm483 = vmor %vm481, %vm482
    %v484 = vsel %vm483, %v475, %v480
    %v485 = vrsqrt.pop %v472
    %v486 = vmul.f32 %v485, %v472
    %v487 = vmul.f32 %v486, %v485
    %v488 = vmul.f32 0.5, %v487
    %v489 = vsub.f32 1.5, %v488
    %v490 = vmul.f32 %v485, %v489
    %vm491 = vweird.f32 %v472
    %vm492 = vweird.f32 %v485
    %vm493 = vmor %vm491, %vm492
    %v494 = vsel %vm493, %v485, %v490
    %v495 = vrsqrt.pop %v473
    %v496 = vmul.f32 %v495, %v473
    %v497 = vmul.f32 %v496, %v495
    %v498 = vmul.f32 0.5, %v497
    %v499 = vsub.f32 1.5, %v498
    %v500 = vmul.f32 %v495, %v499
    %vm501 = vweird.f32 %v473
    %vm502 = vweird.f32 %v495
    %vm503 = vmor %vm501, %vm502
    %v504 = vsel %vm503, %v495, %v500
    %v505 = vrsqrt.pop %v474
    %v506 = vmul.f32 %v505, %v474
    %v507 = vmul.f32 %v506, %v505
    %v508 = vmul.f32 0.5, %v507
    %v509 = vsub.f32 1.5, %v508
    %v510 = vmul.f32 %v505, %v509
    %vm511 = vweird.f32 %v474
    %vm512 = vweird.f32 %v505
    %vm513 = vmor %vm511, %vm512
    %v514 = vsel %vm513, %v505, %v510
    %v515 = vmul.f32 %v467, %v484
    %v516 = vmul.f32 %v468, %v494
    %v517 = vmul.f32 %v469, %v504
    %v518 = vmul.f32 %v470, %v514
    %v520 = vperm.slane %v416, 0
    %v522 = vmul.f32 %v515, %v520
    %v523 = vmul.f32 %v516, %v520
    %v524 = vmul.f32 %v517, %v520
    %v525 = vmul.f32 %v518, %v520
    %v527 = vperm.slane %v418, 0
    %v529 = vadd.f32 %v522, %v527
    %v530 = vadd.f32 %v523, %v527
    %v531 = vadd.f32 %v524, %v527
    %v532 = vadd.f32 %v525, %v527
    %v533 = vpack.c.bf16 %v530, %v529
    %v534 = vpack.c.bf16 %v532, %v531
    %s535 = scalar_lea.vmem [#allocation8], 32
    %v536 = vld [vmem:[%s535] sm:$0xf]
    %v537 = vld [vmem:[%s535 + $0x4] sm:$0xf]
    %v538 = vld [vmem:[%s535 + $0x8] sm:$0xf]
    %v539 = vld [vmem:[%s535 + $0xc] sm:$0xf]
    %v540 = vld [vmem:[%s535 + $0x10] sm:$0xf]
    %v541 = vld [vmem:[%s535 + $0x14] sm:$0xf]
    %v542 = vld [vmem:[%s535 + $0x18] sm:$0xf]
    %v543 = vld [vmem:[%s535 + $0x1c] sm:$0xf]
    %s544 = scalar_lea.vmem %s4, 1
    %v545 = vld [vmem:[%s544] sm:$0x1]
    %v547 = vperm.slane %v545, 0
    %v557 = vunpack.c.l.b16 %v536
    %v558 = vunpack.c.l.b16 %v537
    %v559 = vunpack.c.l.b16 %v538
    %v560 = vunpack.c.l.b16 %v539
    %v561 = vunpack.c.l.b16 %v540
    %v562 = vunpack.c.l.b16 %v541
    %v563 = vunpack.c.l.b16 %v542
    %v564 = vunpack.c.l.b16 %v543
    %v565 = vpack.c.b16 %v558, %v557
    %v566 = vpack.c.b16 %v560, %v559
    %v567 = vpack.c.b16 %v562, %v561
    %v568 = vpack.c.b16 %v564, %v563
    %v574 = vsel %vm166, %v533, 0
    %v577 = vsel %vm166, %v534, 0
    %579 = vmatpush.bf16.msra.mxu0 0
    %580 = vmatpush.bf16.msra.mxu0 0
    %581 = vmatpush.bf16.msra.mxu0 0
    %582 = vmatpush.bf16.msra.mxu0 0
    %583 = vmatpush.bf16.msra.mxu0 %v568
    %584 = vmatpush.bf16.msra.mxu0 %v567
    %585 = vmatpush.bf16.msra.mxu0 %v566
    %586 = vmatpush.bf16.msra.mxu0 %v565
    %587 = vmatmul.bf16.gmra.mxu0 %v574
    %v588 = vpop.f32.mrf.mxu0
    %v589 = vadd.f32 %v547, %v588
    %v590 = vpop.f32.mrf.mxu0
    %v591 = vadd.f32 %v547, %v590
    %592 = vmatmul.bf16.gmra.mxu0 %v577
    %v593 = vpop.f32.mrf.mxu0
    %v594 = vadd.f32 %v547, %v593
    %v595 = vpop.f32.mrf.mxu0
    %v596 = vadd.f32 %v547, %v595
    %597 = vdwg.mxu0
    %v598 = vmax.f32 %v589, 0.0
    %v599 = vmax.f32 %v591, 0.0
    %v600 = vmax.f32 %v594, 0.0
    %v601 = vmax.f32 %v596, 0.0
    %v602 = vpack.c.bf16 %v599, %v598
    %v603 = vpack.c.bf16 %v601, %v600
    %s604 = scalar_lea.vmem [#allocation10], 32
    %v605 = vld [vmem:[%s604] sm:$0xf]
    %v606 = vld [vmem:[%s604 + $0x4] sm:$0xf]
    %v607 = vld [vmem:[%s604 + $0x8] sm:$0xf]
    %v608 = vld [vmem:[%s604 + $0xc] sm:$0xf]
    %v609 = vld [vmem:[%s604 + $0x10] sm:$0xf]
    %v610 = vld [vmem:[%s604 + $0x14] sm:$0xf]
    %v611 = vld [vmem:[%s604 + $0x18] sm:$0xf]
    %v612 = vld [vmem:[%s604 + $0x1c] sm:$0xf]
    %s613 = scalar_lea.vmem [#allocation11], 1
    %v614 = vld [vmem:[%s613] sm:$0x1]
    %v616 = vperm.slane %v614, 0
    %v626 = vunpack.c.l.b16 %v605
    %v627 = vunpack.c.l.b16 %v606
    %v628 = vunpack.c.l.b16 %v607
    %v629 = vunpack.c.l.b16 %v608
    %v630 = vunpack.c.l.b16 %v609
    %v631 = vunpack.c.l.b16 %v610
    %v632 = vunpack.c.l.b16 %v611
    %v633 = vunpack.c.l.b16 %v612
    %v634 = vpack.c.b16 %v627, %v626
    %v635 = vpack.c.b16 %v629, %v628
    %v636 = vpack.c.b16 %v631, %v630
    %v637 = vpack.c.b16 %v633, %v632
    %v643 = vsel %vm166, %v602, 0
    %v646 = vsel %vm166, %v603, 0
    %648 = vmatpush.bf16.msra.mxu0 0
    %649 = vmatpush.bf16.msra.mxu0 0
    %650 = vmatpush.bf16.msra.mxu0 0
    %651 = vmatpush.bf16.msra.mxu0 0
    %652 = vmatpush.bf16.msra.mxu0 %v637
    %653 = vmatpush.bf16.msra.mxu0 %v636
    %654 = vmatpush.bf16.msra.mxu0 %v635
    %655 = vmatpush.bf16.msra.mxu0 %v634
    %656 = vmatmul.bf16.gmra.mxu0 %v643
    %v657 = vpop.f32.mrf.mxu0
    %v658 = vadd.f32 %v616, %v657
    %v659 = vpop.f32.mrf.mxu0
    %v660 = vadd.f32 %v616, %v659
    %661 = vmatmul.bf16.gmra.mxu0 %v646
    %v662 = vpop.f32.mrf.mxu0
    %v663 = vadd.f32 %v616, %v662
    %v664 = vpop.f32.mrf.mxu0
    %v665 = vadd.f32 %v616, %v664
    %666 = vdwg.mxu0
    %v667 = vadd.f32 %v411, %v658
    %v668 = vadd.f32 %v412, %v660
    %v669 = vadd.f32 %v413, %v663
    %v670 = vadd.f32 %v414, %v665
    %v671 = vld [vmem:[#allocation13] sm:$0x3]
    %v672 = vld [vmem:[#allocation14] sm:$0xf]
    %v673 = vld [vmem:[#allocation14 + $0x4] sm:$0xf]
    %v674 = vld [vmem:[%s9] sm:$0xf]
    %v675 = vpack.c.bf16 %v667, %v667
    %v676 = vpack.c.bf16 %v668, %v668
    %v677 = vpack.c.bf16 %v669, %v669
    %v678 = vpack.c.bf16 %v670, %v670
    %v681 = vunpack.c.l.b16 %v675
    %v682 = vunpack.c.l.b16 %v676
    %v683 = vpack.c.b16 %v682, %v681
    %v685 = vsel %vm166, %v671, 0
    %v688 = vsel %vm166, %v683, 0
    %690 = vmatpush.bf16.xpose.msra.mxu0 0
    %691 = vmatpush.bf16.xpose.msra.mxu0 0
    %692 = vmatpush.bf16.xpose.msra.mxu0 0
    %693 = vmatpush.bf16.xpose.msra.mxu0 0
    %694 = vmatpush.bf16.xpose.msra.mxu0 0
    %695 = vmatpush.bf16.xpose.msra.mxu0 0
    %696 = vmatpush.bf16.xpose.msra.mxu0 0
    %697 = vmatpush.bf16.xpose.msra.mxu0 %v688
    %698 = vmatmul.bf16.gmra.mxu0 %v685
    %v699 = vpop.f32.mrf.mxu0
    %v700 = vadd.f32 0.0, %v699
    %v701 = vpop.f32.mrf.mxu0
    %702 = vdwg.mxu0
    %v703 = vpack.c.bf16 %v700, %v700
    %v706 = vunpack.c.l.b16 %v672
    %v707 = vunpack.c.l.b16 %v673
    %v708 = vpack.c.b16 %v707, %v706
    %vm710 = vcmask 130048
    %v712 = vsel %vm710, %v703, 0
    %714 = vmatpush.bf16.msra.mxu0 0
    %715 = vmatpush.bf16.msra.mxu0 0
    %716 = vmatpush.bf16.msra.mxu0 0
    %717 = vmatpush.bf16.msra.mxu0 0
    %718 = vmatpush.bf16.msra.mxu0 0
    %719 = vmatpush.bf16.msra.mxu0 0
    %720 = vmatpush.bf16.msra.mxu0 0
    %721 = vmatpush.bf16.msra.mxu0 %v708
    %722 = vmatmul.bf16.gmra.mxu0 %v712
    %v723 = vpop.f32.mrf.mxu0
    %v724 = vadd.f32 %v674, %v723
    %v725 = vpop.f32.mrf.mxu0
    %726 = vdwg.mxu0
    %v727 = vmul.f32 %v724, %v724
    %vm728 = vcmask 257024
    %v729 = vsel %vm728, %v727, 0.0
    %730 = vadd.xlane.f32.xlu0 %v729
    %v731 = vpop.xlane.xlu0 %730
    %v732 = vrot.slane %v731, 4
    %v733 = vadd.f32 %v731, %v732
    %v734 = vrot.slane %v733, 2
    %v735 = vadd.f32 %v733, %v734
    %v736 = vrot.slane %v735, 1
    %v737 = vadd.f32 %v735, %v736
    %s738 = vtos %v737
    %s739 = smax.f32 %s738, 1e-24
    %v740 = vstv %s739
    %v741 = vrsqrt.pop %v740
    %v742 = vmul.f32 %v741, %v740
    %v743 = vmul.f32 %v742, %v741
    %v744 = vmul.f32 0.5, %v743
    %v745 = vsub.f32 1.5, %v744
    %v746 = vmul.f32 %v741, %v745
    %vm747 = vweird.f32 %v740
    %vm748 = vweird.f32 %v741
    %vm749 = vmor %vm747, %vm748
    %v750 = vsel %vm749, %v741, %v746
    %s751 = vtos %v750
    %v752 = vstv %s751
    %v753 = vmul.f32 %v724, %v752
    %754 = vst.msk [vmem:[#allocation16] sm:$0xf] %vm728, %v753
    %v757 = vunpack.c.l.b16 %v677
    %v758 = vunpack.c.l.b16 %v678
    %v759 = vpack.c.b16 %v758, %v757
    %v761 = vsel %vm166, %v759, 0
    %763 = vmatpush.bf16.xpose.msra.mxu0 0
    %764 = vmatpush.bf16.xpose.msra.mxu0 0
    %765 = vmatpush.bf16.xpose.msra.mxu0 0
    %766 = vmatpush.bf16.xpose.msra.mxu0 0
    %767 = vmatpush.bf16.xpose.msra.mxu0 0
    %768 = vmatpush.bf16.xpose.msra.mxu0 0
    %769 = vmatpush.bf16.xpose.msra.mxu0 0
    %770 = vmatpush.bf16.xpose.msra.mxu0 %v761
    %771 = vmatmul.bf16.gmra.mxu0 %v685
    %v772 = vpop.f32.mrf.mxu0
    %v773 = vadd.f32 0.0, %v772
    %v774 = vpop.f32.mrf.mxu0
    %775 = vdwg.mxu0
    %v776 = vpack.c.bf16 %v773, %v773
    %v778 = vsel %vm710, %v776, 0
    %780 = vmatpush.bf16.msra.mxu0 0
    %781 = vmatpush.bf16.msra.mxu0 0
    %782 = vmatpush.bf16.msra.mxu0 0
    %783 = vmatpush.bf16.msra.mxu0 0
    %784 = vmatpush.bf16.msra.mxu0 0
    %785 = vmatpush.bf16.msra.mxu0 0
    %786 = vmatpush.bf16.msra.mxu0 0
    %787 = vmatpush.bf16.msra.mxu0 %v708
    %788 = vmatmul.bf16.gmra.mxu0 %v778
    %v789 = vpop.f32.mrf.mxu0
    %v790 = vadd.f32 %v674, %v789
    %v791 = vpop.f32.mrf.mxu0
    %792 = vdwg.mxu0
    %v793 = vmul.f32 %v790, %v790
    %v794 = vsel %vm728, %v793, 0.0
    %795 = vadd.xlane.f32.xlu0 %v794
    %v796 = vpop.xlane.xlu0 %795
    %v797 = vrot.slane %v796, 4
    %v798 = vadd.f32 %v796, %v797
    %v799 = vrot.slane %v798, 2
    %v800 = vadd.f32 %v798, %v799
    %v801 = vrot.slane %v800, 1
    %v802 = vadd.f32 %v800, %v801
    %s803 = vtos %v802
    %s804 = smax.f32 %s803, 1e-24
    %v805 = vstv %s804
    %v806 = vrsqrt.pop %v805
    %v807 = vmul.f32 %v806, %v805
    %v808 = vmul.f32 %v807, %v806
    %v809 = vmul.f32 0.5, %v808
    %v810 = vsub.f32 1.5, %v809
    %v811 = vmul.f32 %v806, %v810
    %vm812 = vweird.f32 %v805
    %vm813 = vweird.f32 %v806
    %vm814 = vmor %vm812, %vm813
    %v815 = vsel %vm814, %v806, %v811
    %s816 = vtos %v815
    %v817 = vstv %s816
    %v818 = vmul.f32 %v790, %v817
    %s819 = scalar_lea.vmem [#allocation16], 4
    %820 = vst.msk [vmem:[%s819] sm:$0xf] %vm728, %v818
    // Predicated region
    $region74: #{tpu_custom_call.1} parent=1 // pred_check
      _
    $region75: #{tpu_custom_call.1} parent=1 // pred_check_branch
      %822 = sbr.rel (0) target = $region77
    $region76: #{tpu_custom_call.1} parent=1 // pred_region
      %824 = vsyncadd [#allocation4], 0
      %s825 = sshll.u32 [#allocation16], 4
      %s826 = int_to_ptr.vmem [resolvable:$true] %s825
      %s827 = sshll.u32 %s10, 4
      %s828 = int_to_ptr.hbm [resolvable:$true] %s827
      %833 = dma.vmem_to_hbm [thread:$0]  %s826, 128, %s828, [#allocation4], 64, 64, 4
    $region77: #{tpu_custom_call.1} parent=1 // pred_fallthru
      _
    // Predicated region
    $region78: #{tpu_custom_call.1} parent=1 // pred_check
      _
    $region79: #{tpu_custom_call.1} parent=1 // pred_check_branch
      %835 = sbr.rel (0) target = $region81
    $region80: #{tpu_custom_call.1} parent=1 // pred_region
      %837 = dma.done [#allocation4], 128
    $region81: #{tpu_custom_call.1} parent=1 // pred_fallthru
      _
    %838 = vsyncpa [#allocation3], 1
    %839 = vsyncpa [#allocation6], 1
    %840 = vsyncpa [#allocation9], 1
    %841 = vsyncpa [#allocation12], 1
    %842 = vsyncpa [#allocation15], 1
    %843 = vsyncpa [#allocation4], 1

</llo_original>
